<compile_context>
chip_gen: v5e
topology: v5e:2x2
jax: 0.10.0
libtpu: 0.0.40
codegen_flags: <defaults>
</compile_context>

<pallas_src>
import math

import jax
import jax.numpy as jnp
from jax import lax
from jax.experimental import pallas as pl
from jax.experimental.pallas import tpu as pltpu


def _embedding_gather_kernel(ids_hbm, w_ref, out_ref, ids_smem, ids_sem, row_sem):
    """Gather `tb` embedding rows for one grid step.

    ids_hbm : ANY/HBM (G, tb) int32  -- token ids, one row per grid step
    w_ref   : (V, E) weight table    -- VMEM-resident block (fast path) or raw HBM ref
    out_ref : VMEM (tb, E)           -- pipelined output block for this step
    ids_smem: SMEM (tb,) int32       -- landing buffer for this step's ids
    ids_sem : DMA semaphore for the ids fetch
    row_sem : DMA semaphore shared by all row-gather copies of this step
    """
    i = pl.program_id(0)
    tb = out_ref.shape[0]
    V = w_ref.shape[0]

    # Fetch this step's token ids (tb * 4 bytes) into SMEM. Only a per-block
    # slice ever lives in SMEM, so batch*seq can be arbitrarily large.
    ids_cp = pltpu.make_async_copy(ids_hbm.at[i], ids_smem, ids_sem)
    ids_cp.start()
    ids_cp.wait()

    # Issue all tb row-gather copies. Unrolled so the scalar slots are spent on
    # address math + descriptor issue rather than loop index/branch overhead.
    def _issue(t, carry):
        tok = ids_smem[t]
        # OOB ids are UB in torch; clamp so the DMA address is always valid.
        tok = jnp.clip(tok, 0, V - 1)
        pltpu.make_async_copy(
            w_ref.at[pl.ds(tok, 1), :],
            out_ref.at[pl.ds(t, 1), :],
            row_sem,
        ).start()
        return carry

    lax.fori_loop(0, tb, _issue, None, unroll=8)

    # Single aggregated wait: DMA semaphores count bytes, and the tb copies above
    # all target row_sem and together cover exactly tb*E*itemsize bytes == the
    # full out_ref landing region.  NOTE: keep all tb issues unconditional --
    # masking any of them breaks this byte accounting (hang / early return).
    pltpu.make_async_copy(out_ref, out_ref, row_sem).wait()


def _vmem_capacity_bytes():
    try:
        return int(pltpu.get_tpu_info().vmem_capacity_bytes)
    except Exception:
        return 64 * 1024 * 1024  # conservative default (v7x per-core VMEM)


def _round_up(x, m):
    return -(-x // m) * m


def embedding_forward(ids, weight, *, token_block=1024, force_hbm_gather=False):
    """ids: int array (any shape), weight: (V, E) -> ids.shape + (E,), weight.dtype."""
    lead_shape = tuple(ids.shape)
    N = math.prod(lead_shape) if lead_shape else 1
    V, E = weight.shape
    itemsize = weight.dtype.itemsize
    bytes_per_row = E * itemsize

    vmem_cap = _vmem_capacity_bytes()
    vmem_budget = int(0.85 * vmem_cap)

    # ---- choose the token block (tb) --------------------------------------
    # Generation-aware cap for the double-buffered output block.
    out_budget = min(vmem_cap // 4, 32 * 1024 * 1024)
    tb_vmem = max(8, (out_budget // (2 * bytes_per_row)) // 8 * 8)
    n8 = _round_up(max(N, 1), 8)
    # At least 2 grid steps when possible so both v7x TensorCores get work.
    tb_steps = max(8, (n8 // 2) // 8 * 8) if n8 >= 16 else n8
    tb = max(8, min(int(token_block), tb_vmem, tb_steps) // 8 * 8)
    # Prefer a tb that divides the 8-padded token count exactly (no padding, no
    # post-kernel slice); only shrink down to tb/2 so blocks stay large.
    if n8 % tb != 0:
        for cand in range(tb, max(8, tb // 2) - 1, -8):
            if n8 % cand == 0:
                tb = cand
                break
    G = _round_up(n8, tb) // tb
    n_pad = G * tb

    # ---- ids: (G, tb) int32 in HBM; per-step rows are DMA'd into SMEM ------
    ids_flat = ids.reshape(-1).astype(jnp.int32)
    if n_pad != N:
        ids_flat = jnp.pad(ids_flat, (0, n_pad - N))  # padded slots gather row 0
    ids_blocks = ids_flat.reshape(G, tb)

    # ---- weight path: VMEM-resident table when it fits, else HBM gather ----
    table_bytes = V * E * itemsize
    out_block_bytes = tb * E * itemsize
    slack = 8 * 1024 * 1024
    use_vmem_table = (not force_hbm_gather) and (
        2 * table_bytes + 2 * out_block_bytes + slack <= vmem_budget
    )
    if use_vmem_table:
        # Whole table as one block with a constant index map: fetched from HBM
        # once, resident across all grid steps; row gathers are local VMEM copies.
        w_spec = pl.BlockSpec((V, E), lambda i: (0, 0))
        needed = 2 * table_bytes + 2 * out_block_bytes + slack
    else:
        # Table stays in HBM; rows gathered with per-row HBM->VMEM DMAs.
        w_spec = pl.BlockSpec(memory_space=pl.ANY)
        needed = 2 * out_block_bytes + slack
    vmem_limit = int(min(vmem_budget, max(needed, 32 * 1024 * 1024)))

    out_flat = pl.pallas_call(
        _embedding_gather_kernel,
        out_shape=jax.ShapeDtypeStruct((n_pad, E), weight.dtype),
        grid_spec=pltpu.PrefetchScalarGridSpec(
            num_scalar_prefetch=0,
            grid=(G,),
            in_specs=[
                pl.BlockSpec(memory_space=pl.ANY),  # ids (G, tb): manual SMEM fetch
                w_spec,                             # weight table (VMEM block or HBM)
            ],
            # Note: E is the full last dim, so the block is always layout-legal;
            # if E is not a multiple of 128 the write-back uses masked stores
            # (perf only, not correctness).
            out_specs=pl.BlockSpec((tb, E), lambda i: (i, 0)),
            scratch_shapes=[
                pltpu.SMEM((tb,), jnp.int32),  # per-step ids
                pltpu.SemaphoreType.DMA,       # ids fetch
                pltpu.SemaphoreType.DMA,       # row gathers (aggregated wait)
            ],
        ),
        compiler_params=pltpu.CompilerParams(
            # Each grid step writes a distinct output block -> safe to shard
            # across TensorCores on v7x (no-op on single-TC v5e/v6e).
            dimension_semantics=("parallel",),
            vmem_limit_bytes=vmem_limit,
        ),
    )(ids_blocks, weight)

    out = out_flat if n_pad == N else out_flat[:N]
    return out.reshape(*lead_shape, E)


if __name__ == "__main__":
    # Small, deterministic configuration (module default vocab=64000 shrunk for test).
    vocab_size = 1024
    embedding_size = 128
    batch, seq = 2, 8

    key = jax.random.PRNGKey(0)
    k_w, k_ids, k_ids2 = jax.random.split(key, 3)

    # nn.Embedding weight init in the module: uniform_(0, 0.1)
    weight = jax.random.uniform(
        k_w, (vocab_size, embedding_size), dtype=jnp.float32, minval=0.0, maxval=0.1
    )
    ids = jax.random.randint(k_ids, (batch, seq), 0, vocab_size, dtype=jnp.int32)

    ref = jnp.take(weight, ids.reshape(-1), axis=0).reshape(batch, seq, embedding_size)

    # 1) Default path: VMEM-resident table (fits easily), 2 grid steps, no padding.
    out = jax.block_until_ready(embedding_forward(ids, weight))
    assert out.shape == (batch, seq, embedding_size)
    assert out.dtype == jnp.float32
    assert jnp.allclose(out, ref), "mismatch vs reference (VMEM-resident table path)"

    # 2) Force the HBM per-row-DMA gather path (used when the table does not fit VMEM).
    out_hbm = jax.block_until_ready(
        embedding_forward(ids, weight, force_hbm_gather=True)
    )
    assert jnp.allclose(out_hbm, ref), "mismatch vs reference (HBM gather path)"

    # 3) Non-multiple-of-8 token count exercises the padding + tail-slice path.
    ids_odd = jax.random.randint(k_ids2, (3, 5), 0, vocab_size, dtype=jnp.int32)
    ref_odd = jnp.take(weight, ids_odd.reshape(-1), axis=0).reshape(
        3, 5, embedding_size
    )
    out_odd = jax.block_until_ready(embedding_forward(ids_odd, weight))
    assert jnp.allclose(out_odd, ref_odd), "mismatch vs reference (padded tail path)"

    print("KERNEL_OK")
</pallas_src>

<mosaic_0001>
module attributes {stable_mosaic.version = 11 : i64} {
  func.func @_embedding_gather_kernel(%arg0: i32, %arg1: memref<2x8xi32, #tpu.memory_space<any>>, %arg2: memref<1024x128xf32, #tpu.memory_space<vmem>>, %arg3: memref<8x128xf32, #tpu.memory_space<vmem>>, %arg4: memref<8xi32, #tpu.memory_space<smem>>, %arg5: memref<!tpu.dma_semaphore, #tpu.memory_space<semaphore_mem>>, %arg6: memref<!tpu.dma_semaphore, #tpu.memory_space<semaphore_mem>>) attributes {dimension_semantics = [#tpu.dimension_semantics<parallel>], iteration_bounds = array<i64: 2>, scalar_prefetch = 0 : i64, scratch_operands = 3 : i64, tpu.core_type = #tpu.core_type<tc>, window_params = [{}, {pipeline_mode = #tpu.pipeline_mode<synchronous>, transform_indices = @transform_1, window_bounds = array<i64: 1024, 128>}, {transform_indices = @transform_2, window_bounds = array<i64: 8, 128>}]} {
    %c0_i32 = arith.constant 0 : i32
    %0 = tpu.memref_slice %arg1[%arg0, %c0_i32] : memref<2x8xi32, #tpu.memory_space<any>> -> memref<1x8xi32, #tpu.memory_space<any>>
    %1 = tpu.memref_squeeze %0 : memref<1x8xi32, #tpu.memory_space<any>> -> memref<8xi32, #tpu.memory_space<any>>
    tpu.enqueue_dma source(%1 : memref<8xi32, #tpu.memory_space<any>>) target(%arg4 : memref<8xi32, #tpu.memory_space<smem>>) target_semaphore(%arg5 : memref<!tpu.dma_semaphore, #tpu.memory_space<semaphore_mem>>)
    %c0_i32_0 = arith.constant 0 : i32
    %2 = tpu.memref_slice %arg1[%arg0, %c0_i32_0] : memref<2x8xi32, #tpu.memory_space<any>> -> memref<1x8xi32, #tpu.memory_space<any>>
    %3 = tpu.memref_squeeze %2 : memref<1x8xi32, #tpu.memory_space<any>> -> memref<8xi32, #tpu.memory_space<any>>
    tpu.wait_dma2 semaphore(%arg5 : memref<!tpu.dma_semaphore, #tpu.memory_space<semaphore_mem>>) src(%3 : memref<8xi32, #tpu.memory_space<any>>) dst(%arg4 : memref<8xi32, #tpu.memory_space<smem>>)
    %c0_i32_1 = arith.constant 0 : i32
    %4 = arith.index_cast %c0_i32_1 : i32 to index
    %5 = memref.load %arg4[%4] : memref<8xi32, #tpu.memory_space<smem>>
    %c0_i32_2 = arith.constant 0 : i32
    %c1023_i32 = arith.constant 1023 : i32
    %6 = arith.maxsi %c0_i32_2, %5 : i32
    %7 = arith.minsi %c1023_i32, %6 : i32
    %c0_i32_3 = arith.constant 0 : i32
    %8 = tpu.memref_slice %arg2[%7, %c0_i32_3] : memref<1024x128xf32, #tpu.memory_space<vmem>> -> memref<1x128xf32, #tpu.memory_space<vmem>>
    %c0_i32_4 = arith.constant 0 : i32
    %9 = tpu.memref_slice %arg3[%c0_i32_1, %c0_i32_4] : memref<8x128xf32, #tpu.memory_space<vmem>> -> memref<1x128xf32, #tpu.memory_space<vmem>>
    tpu.enqueue_dma source(%8 : memref<1x128xf32, #tpu.memory_space<vmem>>) target(%9 : memref<1x128xf32, #tpu.memory_space<vmem>>) target_semaphore(%arg6 : memref<!tpu.dma_semaphore, #tpu.memory_space<semaphore_mem>>)
    %c1_i32 = arith.constant 1 : i32
    %10 = arith.index_cast %c1_i32 : i32 to index
    %11 = memref.load %arg4[%10] : memref<8xi32, #tpu.memory_space<smem>>
    %c0_i32_5 = arith.constant 0 : i32
    %c1023_i32_6 = arith.constant 1023 : i32
    %12 = arith.maxsi %c0_i32_5, %11 : i32
    %13 = arith.minsi %c1023_i32_6, %12 : i32
    %c0_i32_7 = arith.constant 0 : i32
    %14 = tpu.memref_slice %arg2[%13, %c0_i32_7] : memref<1024x128xf32, #tpu.memory_space<vmem>> -> memref<1x128xf32, #tpu.memory_space<vmem>>
    %c0_i32_8 = arith.constant 0 : i32
    %15 = tpu.memref_slice %arg3[%c1_i32, %c0_i32_8] : memref<8x128xf32, #tpu.memory_space<vmem>> -> memref<1x128xf32, #tpu.memory_space<vmem>>
    tpu.enqueue_dma source(%14 : memref<1x128xf32, #tpu.memory_space<vmem>>) target(%15 : memref<1x128xf32, #tpu.memory_space<vmem>>) target_semaphore(%arg6 : memref<!tpu.dma_semaphore, #tpu.memory_space<semaphore_mem>>)
    %c2_i32 = arith.constant 2 : i32
    %16 = arith.index_cast %c2_i32 : i32 to index
    %17 = memref.load %arg4[%16] : memref<8xi32, #tpu.memory_space<smem>>
    %c0_i32_9 = arith.constant 0 : i32
    %c1023_i32_10 = arith.constant 1023 : i32
    %18 = arith.maxsi %c0_i32_9, %17 : i32
    %19 = arith.minsi %c1023_i32_10, %18 : i32
    %c0_i32_11 = arith.constant 0 : i32
    %20 = tpu.memref_slice %arg2[%19, %c0_i32_11] : memref<1024x128xf32, #tpu.memory_space<vmem>> -> memref<1x128xf32, #tpu.memory_space<vmem>>
    %c0_i32_12 = arith.constant 0 : i32
    %21 = tpu.memref_slice %arg3[%c2_i32, %c0_i32_12] : memref<8x128xf32, #tpu.memory_space<vmem>> -> memref<1x128xf32, #tpu.memory_space<vmem>>
    tpu.enqueue_dma source(%20 : memref<1x128xf32, #tpu.memory_space<vmem>>) target(%21 : memref<1x128xf32, #tpu.memory_space<vmem>>) target_semaphore(%arg6 : memref<!tpu.dma_semaphore, #tpu.memory_space<semaphore_mem>>)
    %c3_i32 = arith.constant 3 : i32
    %22 = arith.index_cast %c3_i32 : i32 to index
    %23 = memref.load %arg4[%22] : memref<8xi32, #tpu.memory_space<smem>>
    %c0_i32_13 = arith.constant 0 : i32
    %c1023_i32_14 = arith.constant 1023 : i32
    %24 = arith.maxsi %c0_i32_13, %23 : i32
    %25 = arith.minsi %c1023_i32_14, %24 : i32
    %c0_i32_15 = arith.constant 0 : i32
    %26 = tpu.memref_slice %arg2[%25, %c0_i32_15] : memref<1024x128xf32, #tpu.memory_space<vmem>> -> memref<1x128xf32, #tpu.memory_space<vmem>>
    %c0_i32_16 = arith.constant 0 : i32
    %27 = tpu.memref_slice %arg3[%c3_i32, %c0_i32_16] : memref<8x128xf32, #tpu.memory_space<vmem>> -> memref<1x128xf32, #tpu.memory_space<vmem>>
    tpu.enqueue_dma source(%26 : memref<1x128xf32, #tpu.memory_space<vmem>>) target(%27 : memref<1x128xf32, #tpu.memory_space<vmem>>) target_semaphore(%arg6 : memref<!tpu.dma_semaphore, #tpu.memory_space<semaphore_mem>>)
    %c4_i32 = arith.constant 4 : i32
    %28 = arith.index_cast %c4_i32 : i32 to index
    %29 = memref.load %arg4[%28] : memref<8xi32, #tpu.memory_space<smem>>
    %c0_i32_17 = arith.constant 0 : i32
    %c1023_i32_18 = arith.constant 1023 : i32
    %30 = arith.maxsi %c0_i32_17, %29 : i32
    %31 = arith.minsi %c1023_i32_18, %30 : i32
    %c0_i32_19 = arith.constant 0 : i32
    %32 = tpu.memref_slice %arg2[%31, %c0_i32_19] : memref<1024x128xf32, #tpu.memory_space<vmem>> -> memref<1x128xf32, #tpu.memory_space<vmem>>
    %c0_i32_20 = arith.constant 0 : i32
    %33 = tpu.memref_slice %arg3[%c4_i32, %c0_i32_20] : memref<8x128xf32, #tpu.memory_space<vmem>> -> memref<1x128xf32, #tpu.memory_space<vmem>>
    tpu.enqueue_dma source(%32 : memref<1x128xf32, #tpu.memory_space<vmem>>) target(%33 : memref<1x128xf32, #tpu.memory_space<vmem>>) target_semaphore(%arg6 : memref<!tpu.dma_semaphore, #tpu.memory_space<semaphore_mem>>)
    %c5_i32 = arith.constant 5 : i32
    %34 = arith.index_cast %c5_i32 : i32 to index
    %35 = memref.load %arg4[%34] : memref<8xi32, #tpu.memory_space<smem>>
    %c0_i32_21 = arith.constant 0 : i32
    %c1023_i32_22 = arith.constant 1023 : i32
    %36 = arith.maxsi %c0_i32_21, %35 : i32
    %37 = arith.minsi %c1023_i32_22, %36 : i32
    %c0_i32_23 = arith.constant 0 : i32
    %38 = tpu.memref_slice %arg2[%37, %c0_i32_23] : memref<1024x128xf32, #tpu.memory_space<vmem>> -> memref<1x128xf32, #tpu.memory_space<vmem>>
    %c0_i32_24 = arith.constant 0 : i32
    %39 = tpu.memref_slice %arg3[%c5_i32, %c0_i32_24] : memref<8x128xf32, #tpu.memory_space<vmem>> -> memref<1x128xf32, #tpu.memory_space<vmem>>
    tpu.enqueue_dma source(%38 : memref<1x128xf32, #tpu.memory_space<vmem>>) target(%39 : memref<1x128xf32, #tpu.memory_space<vmem>>) target_semaphore(%arg6 : memref<!tpu.dma_semaphore, #tpu.memory_space<semaphore_mem>>)
    %c6_i32 = arith.constant 6 : i32
    %40 = arith.index_cast %c6_i32 : i32 to index
    %41 = memref.load %arg4[%40] : memref<8xi32, #tpu.memory_space<smem>>
    %c0_i32_25 = arith.constant 0 : i32
    %c1023_i32_26 = arith.constant 1023 : i32
    %42 = arith.maxsi %c0_i32_25, %41 : i32
    %43 = arith.minsi %c1023_i32_26, %42 : i32
    %c0_i32_27 = arith.constant 0 : i32
    %44 = tpu.memref_slice %arg2[%43, %c0_i32_27] : memref<1024x128xf32, #tpu.memory_space<vmem>> -> memref<1x128xf32, #tpu.memory_space<vmem>>
    %c0_i32_28 = arith.constant 0 : i32
    %45 = tpu.memref_slice %arg3[%c6_i32, %c0_i32_28] : memref<8x128xf32, #tpu.memory_space<vmem>> -> memref<1x128xf32, #tpu.memory_space<vmem>>
    tpu.enqueue_dma source(%44 : memref<1x128xf32, #tpu.memory_space<vmem>>) target(%45 : memref<1x128xf32, #tpu.memory_space<vmem>>) target_semaphore(%arg6 : memref<!tpu.dma_semaphore, #tpu.memory_space<semaphore_mem>>)
    %c7_i32 = arith.constant 7 : i32
    %46 = arith.index_cast %c7_i32 : i32 to index
    %47 = memref.load %arg4[%46] : memref<8xi32, #tpu.memory_space<smem>>
    %c0_i32_29 = arith.constant 0 : i32
    %c1023_i32_30 = arith.constant 1023 : i32
    %48 = arith.maxsi %c0_i32_29, %47 : i32
    %49 = arith.minsi %c1023_i32_30, %48 : i32
    %c0_i32_31 = arith.constant 0 : i32
    %50 = tpu.memref_slice %arg2[%49, %c0_i32_31] : memref<1024x128xf32, #tpu.memory_space<vmem>> -> memref<1x128xf32, #tpu.memory_space<vmem>>
    %c0_i32_32 = arith.constant 0 : i32
    %51 = tpu.memref_slice %arg3[%c7_i32, %c0_i32_32] : memref<8x128xf32, #tpu.memory_space<vmem>> -> memref<1x128xf32, #tpu.memory_space<vmem>>
    tpu.enqueue_dma source(%50 : memref<1x128xf32, #tpu.memory_space<vmem>>) target(%51 : memref<1x128xf32, #tpu.memory_space<vmem>>) target_semaphore(%arg6 : memref<!tpu.dma_semaphore, #tpu.memory_space<semaphore_mem>>)
    %c8_i32 = arith.constant 8 : i32
    tpu.wait_dma2 semaphore(%arg6 : memref<!tpu.dma_semaphore, #tpu.memory_space<semaphore_mem>>) src(%arg3 : memref<8x128xf32, #tpu.memory_space<vmem>>) dst(%arg3 : memref<8x128xf32, #tpu.memory_space<vmem>>)
    return
  }
  func.func @transform_1(%arg0: i32) -> (i32, i32) {
    %c0_i32 = arith.constant 0 : i32
    %c0_i32_0 = arith.constant 0 : i32
    %c0_i32_1 = arith.constant 0 : i32
    return %c0_i32, %c0_i32_0 : i32, i32
  }
  func.func @transform_2(%arg0: i32) -> (i32, i32) {
    %c0_i32 = arith.constant 0 : i32
    %c0_i32_0 = arith.constant 0 : i32
    return %arg0, %c0_i32 : i32, i32
  }
}

</mosaic_0001>

<llo_original>
// kernel: tpu_custom_call.1
$region0: #{tpu_custom_call.1}
  #allocation0 [shape = 'u32[]', space=smem, size = 0x4, offset = 0x4, fixed_abs, tag = 'smem constant byte address 0x4 - core index']
  #allocation1 [shape = 'u32[72,128]{1,0:T(1,128)}', space=vmem, size = 0x9000, scoped, tag = 'internal scratch']
  #allocation2 [shape = 's32[8]{0:T(128)}', space=smem, size = 0x200, scoped, tag = 'scratch operand']
  #allocation3 [shape = 's32[1]{0}', space=sflag, size = 0x4, scoped, tag = 'scratch operand']
  #allocation4 [shape = 's32[1]{0}', space=sflag, size = 0x4, scoped, tag = 'scratch operand']
  #allocation9 [shape = 's32[]', space=sflag, size = 0x4, offset = 0, fixed_abs, tag = 'sflag constant byte address 0x0 - dummy sync flag']
  #allocation10 [shape = 's32[]', space=sflag, size = 0x4, offset = 0, fixed_abs, tag = 'sflag constant byte address 0x0 - dummy sync flag']
  #allocation11 [shape = 'u32[]', space=smem, size = 0x4, offset = 0x44, fixed_abs, tag = 'smem constant byte address 0x44 - assertion arg 0']
  #allocation12 [shape = 'u32[]', space=smem, size = 0x4, offset = 0x48, fixed_abs, tag = 'smem constant byte address 0x48 - assertion arg 1']
  #allocation13 [shape = 's32[]', space=sflag, size = 0x4, offset = 0, fixed_abs, tag = 'sflag constant byte address 0x0 - dummy sync flag']
  #allocation14 [shape = 's32[]', space=sflag, size = 0x4, offset = 0, fixed_abs, tag = 'sflag constant byte address 0x0 - dummy sync flag']
  #allocation15 [shape = 's32[]', space=sflag, size = 0x4, offset = 0, fixed_abs, tag = 'sflag constant byte address 0x0 - dummy sync flag']
  #allocation16 [shape = 's32[]', space=sflag, size = 0x4, offset = 0, fixed_abs, tag = 'sflag constant byte address 0x0 - dummy sync flag']
  #allocation17 [shape = 's32[]', space=sflag, size = 0x4, offset = 0, fixed_abs, tag = 'sflag constant byte address 0x0 - dummy sync flag']
  #allocation18 [shape = 's32[]', space=sflag, size = 0x4, offset = 0, fixed_abs, tag = 'sflag constant byte address 0x0 - dummy sync flag']
  #allocation19 [shape = 's32[]', space=sflag, size = 0x4, offset = 0, fixed_abs, tag = 'sflag constant byte address 0x0 - dummy sync flag']
  #allocation20 [shape = 's32[]', space=sflag, size = 0x4, offset = 0, fixed_abs, tag = 'sflag constant byte address 0x0 - dummy sync flag']
  %s0 = inlined_call_operand.hbm [shape: s32[2,8], index: 0, kind: input, shape index: {}]
  %s1 = inlined_call_operand.hbm [shape: f32[1024,128], index: 1, kind: input, shape index: {}]
  %s2 = inlined_call_operand.hbm [shape: f32[16,128], index: 2, kind: output, shape index: {}]
  %s3 = sld [smem:[#allocation0]]
  $region285: #{tpu_custom_call.1} parent=0
    _
  %s5 = ssub.s32 1, %s3
  %s6 = scalar_select 0, %s5, %s3
  $region1: #{tpu_custom_call.1} parent=0
    #allocation5 [shape = 'u8[524288]{0}', space=vmem, size = 0x80000, scoped, tag = 'input window, operand 1, single buffered']
    #allocation6 [shape = 's32[2]{0}', space=sflag, size = 0x8, scoped, tag = 'scoped memory for tpu_custom_call.1']
    #allocation7 [shape = 's32[2]{0}', space=sflag, size = 0x8, scoped, tag = 'scoped memory for tpu_custom_call.1']
    #allocation8 [shape = 'u8[8192]{0}', space=vmem, size = 0x2000, scoped, tag = 'output window, operand 0']
    %7 = vsyncpa [#allocation6], 0
    %8 = vsyncpa [#allocation7], 0
    %s9 = scalar_lea.sflag [#allocation7], 1
    %10 = vsyncpa %s9, 0
    loop: start=0, step=1, limit=4
    $region2: #{tpu_custom_call.1} parent=1 // loop_pre_header
      _
    $region3: #{tpu_custom_call.1} parent=1 // loop_header
      %s12 = sphi 0, %s16
      %p13 = scmp.ge.s32.totalorder %s12, 4
      %s20 = sphi 0, %s20
      %s22 = sphi 0, %s20
      %s23 = sphi 0, %s22
      %s37 = sphi 0, %s23
      %s43 = sphi 0, %s45
      %s46 = sphi 0, %s43
      %s47 = sphi 0, %s46
      %s63 = sphi 0, %s47
    $region4: #{tpu_custom_call.1} parent=1 // loop_header_branch
      %15 = sbr.rel (%p13) target = $region8
    $region5: #{tpu_custom_call.1} parent=1 // loop_body
      %s17 = ssub.s32 %s12, 1
      %s18 = ssub.s32 %s12, 2
      %s19 = sadd.s32 %s12, 1
      %s21 = sadd.s32 %s20, 1
      %p24 = scmp.eq.s32.totalorder %s12, 1
      %p25 = scmp.ne.s32.totalorder %s20, %s22
      %p26 = scmp.eq.s32.totalorder %s12, 0
      %p27 = por %p25, %p26
      %p28 = scmp.ne.s32.totalorder %s20, %s22
      %p29 = scmp.eq.s32.totalorder %s17, 1
      %p30 = por %p28, %p29
      %p31 = scmp.ne.s32.totalorder %s22, %s23
      %p32 = scmp.eq.s32.totalorder %s17, 0
      %p33 = por %p31, %p32
      %p34 = scmp.ne.s32.totalorder %s22, %s23
      %p35 = scmp.eq.s32.totalorder %s18, 1
      %p36 = por %p34, %p35
      %p38 = scmp.ne.s32.totalorder %s23, %s37
      %p39 = scmp.eq.s32.totalorder %s18, 0
      %p40 = por %p38, %p39
      %s41 = ssub.s32 %s12, %s19
      %p42 = scmp.eq.s32.totalorder %s41, 0
      %s44 = sadd.s32 %s43, 1
      %s45 = scalar_select %p42, %s43, %s44
      %p48 = pneg %p42
      %p49 = scmp.eq.s32.totalorder %s12, 1
      %p50 = por %p48, %p49
      %p51 = scmp.ne.s32.totalorder %s43, %s46
      %p52 = scmp.eq.s32.totalorder %s12, 0
      %p53 = por %p51, %p52
      %p54 = scmp.ne.s32.totalorder %s43, %s46
      %p55 = scmp.eq.s32.totalorder %s17, 1
      %p56 = por %p54, %p55
      %p57 = scmp.ne.s32.totalorder %s46, %s47
      %p58 = scmp.eq.s32.totalorder %s17, 0
      %p59 = por %p57, %p58
      %p60 = scmp.ne.s32.totalorder %s46, %s47
      %p61 = scmp.eq.s32.totalorder %s18, 1
      %p62 = por %p60, %p61
      %p64 = scmp.ne.s32.totalorder %s47, %s63
      %p65 = scmp.eq.s32.totalorder %s18, 0
      %p66 = por %p64, %p65
      %p67 = scmp.le.s32.totalorder 1, %s12
      %p68 = scmp.lt.s32.totalorder %s12, 3
      %p69 = pnand %p67, %p68
      %p70 = pneg %p69
      // Predicated region
      $region9: #{tpu_custom_call.1} parent=5 // pred_check
        _
      $region10: #{tpu_custom_call.1} parent=5 // pred_check_branch
        %72 = sbr.rel (%p69) target = $region12
      $region11: #{tpu_custom_call.1} parent=5 // pred_region
        %s73 = ssub.s32 %s12, 1
        // Predicated region
        $region13: #{tpu_custom_call.1} parent=11 // pred_check
          %p74 = pneg %p33
        $region14: #{tpu_custom_call.1} parent=11 // pred_check_branch
          %76 = sbr.rel (%p74) target = $region16
        $region15: #{tpu_custom_call.1} parent=11 // pred_region
          %78 = vsyncadd [#allocation6], 0
          %s79 = sshll.u32 %s1, 4
          %s80 = int_to_ptr.hbm [resolvable:$true] %s79
          %s81 = sshll.u32 [#allocation5], 4
          %s82 = int_to_ptr.vmem [resolvable:$true] %s81
          %87 = dma.hbm_to_vmem [thread:$0]  %s80, 16384, %s82, [#allocation6], 128, 128, 8
        $region16: #{tpu_custom_call.1} parent=11 // pred_fallthru
          _
      $region12: #{tpu_custom_call.1} parent=5 // pred_fallthru
        _
      %p88 = scmp.lt.s32.totalorder %s12, 2
      // Predicated region
      $region17: #{tpu_custom_call.1} parent=5 // pred_check
        %p89 = pneg %p88
      $region18: #{tpu_custom_call.1} parent=5 // pred_check_branch
        %91 = sbr.rel (%p89) target = $region20
      $region19: #{tpu_custom_call.1} parent=5 // pred_region
        _
      $region20: #{tpu_custom_call.1} parent=5 // pred_fallthru
        _
      %p92 = scmp.le.s32.totalorder 1, %s12
      %p93 = scmp.lt.s32.totalorder %s12, 3
      %p94 = pnand %p92, %p93
      %p95 = pneg %p94
      // Predicated region
      $region21: #{tpu_custom_call.1} parent=5 // pred_check
        _
      $region22: #{tpu_custom_call.1} parent=5 // pred_check_branch
        %97 = sbr.rel (%p94) target = $region24
      $region23: #{tpu_custom_call.1} parent=5 // pred_region
        %s98 = ssub.s32 %s12, 1
        // Predicated region
        $region25: #{tpu_custom_call.1} parent=23 // pred_check
          %p99 = pneg %p33
        $region26: #{tpu_custom_call.1} parent=23 // pred_check_branch
          %101 = sbr.rel (%p99) target = $region28
        $region27: #{tpu_custom_call.1} parent=23 // pred_region
          %103 = dma.done [#allocation6], 16384
        $region28: #{tpu_custom_call.1} parent=23 // pred_fallthru
          _
        %p104 = pneg %p33
        %p105 = pneg %p30
        %p106 = pneg %p59
        %p107 = pneg %p56
        %s108 = sand.u32 %s46, 1
        %s109 = scalar_lea.sflag [#allocation7], %s108
        %s110 = sand.u32 %s46, 1
        %s111 = smul.addr %s110, 8
        %s112 = scalar_lea.vmem [#allocation8], %s111
        %s113 = scalar_lea.hbm %s0, %s17
        // Predicated region
        $region29: #{tpu_custom_call.1} parent=23 // pred_check
          _
        $region30: #{tpu_custom_call.1} parent=23 // pred_check_branch
          %115 = sbr.rel target = $region32
        $region31: #{tpu_custom_call.1} parent=23 // pred_region
          %116 = sst [smem:[#allocation11]] [#allocation10]
          %117 = sst [smem:[#allocation12]] [#allocation9]
        $region32: #{tpu_custom_call.1} parent=23 // pred_fallthru
          _
        %119 = shalt.err (0)
        %s121 = sshll.u32 %s113, 4
        %s122 = int_to_ptr.hbm [resolvable:$true] %s121
        %124 = dma.hbm_to_smem %s122, 16, [#allocation2], [#allocation3]
        %126 = dma.done [#allocation3], 16
        %127 = sfence
        %s128 = sld [smem:[#allocation2]]
        %p129 = scmp.gt.s32.totalorder %s128, 0
        %s130 = scalar_select %p129, %s128, 0
        %p131 = scmp.lt.s32.totalorder %s130, 1023
        %s132 = scalar_select %p131, %s130, 1023
        %s133 = scalar_lea.vmem [#allocation5], %s132
        // Predicated region
        $region33: #{tpu_custom_call.1} parent=23 // pred_check
          _
        $region34: #{tpu_custom_call.1} parent=23 // pred_check_branch
          %135 = sbr.rel target = $region36
        $region35: #{tpu_custom_call.1} parent=23 // pred_region
          // Predicated region
          $region48: #{tpu_custom_call.1} parent=35 // pred_check
            _
          $region49: #{tpu_custom_call.1} parent=35 // pred_check_branch
            %151 = sbr.rel (0) target = $region51
          $region50: #{tpu_custom_call.1} parent=35 // pred_region
            %s153 = ssub.s32 2, 1
            loop: start=0, step=1, limit=1
            $region52: #{tpu_custom_call.1} parent=50 // loop_pre_header
              _
            $region53: #{tpu_custom_call.1} parent=50 // loop_header
              %s155 = sphi 0, %s159
              %p156 = scmp.ge.s32.totalorder %s155, 1
              %s160 = sphi %s133, %s133
              %s161 = sphi %s112, %s112
            $region54: #{tpu_custom_call.1} parent=50 // loop_header_branch
              %158 = sbr.rel (%p156) target = $region58
            $region55: #{tpu_custom_call.1} parent=50 // loop_body
              %v162 = vld [vmem:[%s160] sm:%s153]
              %163 = vst [vmem:[%s161] sm:%s153] %v162
            $region56: #{tpu_custom_call.1} parent=50 // loop_footer
              %s159 = sadd.s32 1, %s155
            $region57: #{tpu_custom_call.1} parent=50 // loop_footer_branch
              %154 = sbr.rel target = $region53
            $region58: #{tpu_custom_call.1} parent=50 // loop_exit
              _
          $region51: #{tpu_custom_call.1} parent=35 // pred_fallthru
            _
        $region36: #{tpu_custom_call.1} parent=23 // pred_fallthru
          _
        // Predicated region
        $region37: #{tpu_custom_call.1} parent=23 // pred_check
          _
        $region38: #{tpu_custom_call.1} parent=23 // pred_check_branch
          %137 = sbr.rel (0) target = $region40
        $region39: #{tpu_custom_call.1} parent=23 // pred_region
          %s139 = ssub.s32 2, 1
          loop: start=0, step=1, limit=1
          $region41: #{tpu_custom_call.1} parent=39 // loop_pre_header
            _
          $region42: #{tpu_custom_call.1} parent=39 // loop_header
            %s141 = sphi 0, %s145
            %p142 = scmp.ge.s32.totalorder %s141, 1
            %s146 = sphi %s133, %s133
            %s147 = sphi %s112, %s112
          $region43: #{tpu_custom_call.1} parent=39 // loop_header_branch
            %144 = sbr.rel (%p142) target = $region47
          $region44: #{tpu_custom_call.1} parent=39 // loop_body
            %v148 = vld [vmem:[%s146] sm:%s139]
            %149 = vst [vmem:[%s147] sm:%s139] %v148
          $region45: #{tpu_custom_call.1} parent=39 // loop_footer
            %s145 = sadd.s32 1, %s141
          $region46: #{tpu_custom_call.1} parent=39 // loop_footer_branch
            %140 = sbr.rel target = $region42
          $region47: #{tpu_custom_call.1} parent=39 // loop_exit
            _
        $region40: #{tpu_custom_call.1} parent=23 // pred_fallthru
          _
        // Predicated region
        $region59: #{tpu_custom_call.1} parent=23 // pred_check
          _
        $region60: #{tpu_custom_call.1} parent=23 // pred_check_branch
          %166 = sbr.rel (0) target = $region62
        $region61: #{tpu_custom_call.1} parent=23 // pred_region
          %167 = vsyncadd [#allocation4], 16
        $region62: #{tpu_custom_call.1} parent=23 // pred_fallthru
          _
        %s168 = sld [smem:[#allocation2 + $0x1]]
        %p169 = scmp.gt.s32.totalorder %s168, 0
        %s170 = scalar_select %p169, %s168, 0
        %p171 = scmp.lt.s32.totalorder %s170, 1023
        %s172 = scalar_select %p171, %s170, 1023
        %s173 = scalar_lea.vmem [#allocation5], %s172
        %s174 = scalar_lea.vmem %s112, 1 [#allocation8]
        // Predicated region
        $region63: #{tpu_custom_call.1} parent=23 // pred_check
          _
        $region64: #{tpu_custom_call.1} parent=23 // pred_check_branch
          %176 = sbr.rel target = $region66
        $region65: #{tpu_custom_call.1} parent=23 // pred_region
          // Predicated region
          $region78: #{tpu_custom_call.1} parent=65 // pred_check
            _
          $region79: #{tpu_custom_call.1} parent=65 // pred_check_branch
            %192 = sbr.rel (0) target = $region81
          $region80: #{tpu_custom_call.1} parent=65 // pred_region
            %s194 = ssub.s32 2, 1
            loop: start=0, step=1, limit=1
            $region82: #{tpu_custom_call.1} parent=80 // loop_pre_header
              _
            $region83: #{tpu_custom_call.1} parent=80 // loop_header
              %s196 = sphi 0, %s200
              %p197 = scmp.ge.s32.totalorder %s196, 1
              %s201 = sphi %s173, %s173
              %s202 = sphi %s174, %s174
            $region84: #{tpu_custom_call.1} parent=80 // loop_header_branch
              %199 = sbr.rel (%p197) target = $region88
            $region85: #{tpu_custom_call.1} parent=80 // loop_body
              %v203 = vld [vmem:[%s201] sm:%s194]
              %204 = vst [vmem:[%s202] sm:%s194] %v203
            $region86: #{tpu_custom_call.1} parent=80 // loop_footer
              %s200 = sadd.s32 1, %s196
            $region87: #{tpu_custom_call.1} parent=80 // loop_footer_branch
              %195 = sbr.rel target = $region83
            $region88: #{tpu_custom_call.1} parent=80 // loop_exit
              _
          $region81: #{tpu_custom_call.1} parent=65 // pred_fallthru
            _
        $region66: #{tpu_custom_call.1} parent=23 // pred_fallthru
          _
        // Predicated region
        $region67: #{tpu_custom_call.1} parent=23 // pred_check
          _
        $region68: #{tpu_custom_call.1} parent=23 // pred_check_branch
          %178 = sbr.rel (0) target = $region70
        $region69: #{tpu_custom_call.1} parent=23 // pred_region
          %s180 = ssub.s32 2, 1
          loop: start=0, step=1, limit=1
          $region71: #{tpu_custom_call.1} parent=69 // loop_pre_header
            _
          $region72: #{tpu_custom_call.1} parent=69 // loop_header
            %s182 = sphi 0, %s186
            %p183 = scmp.ge.s32.totalorder %s182, 1
            %s187 = sphi %s173, %s173
            %s188 = sphi %s174, %s174
          $region73: #{tpu_custom_call.1} parent=69 // loop_header_branch
            %185 = sbr.rel (%p183) target = $region77
          $region74: #{tpu_custom_call.1} parent=69 // loop_body
            %v189 = vld [vmem:[%s187] sm:%s180]
            %190 = vst [vmem:[%s188] sm:%s180] %v189
          $region75: #{tpu_custom_call.1} parent=69 // loop_footer
            %s186 = sadd.s32 1, %s182
          $region76: #{tpu_custom_call.1} parent=69 // loop_footer_branch
            %181 = sbr.rel target = $region72
          $region77: #{tpu_custom_call.1} parent=69 // loop_exit
            _
        $region70: #{tpu_custom_call.1} parent=23 // pred_fallthru
          _
        // Predicated region
        $region89: #{tpu_custom_call.1} parent=23 // pred_check
          _
        $region90: #{tpu_custom_call.1} parent=23 // pred_check_branch
          %207 = sbr.rel (0) target = $region92
        $region91: #{tpu_custom_call.1} parent=23 // pred_region
          %208 = vsyncadd [#allocation4], 16
        $region92: #{tpu_custom_call.1} parent=23 // pred_fallthru
          _
        %s209 = sld [smem:[#allocation2 + $0x2]]
        %p210 = scmp.gt.s32.totalorder %s209, 0
        %s211 = scalar_select %p210, %s209, 0
        %p212 = scmp.lt.s32.totalorder %s211, 1023
        %s213 = scalar_select %p212, %s211, 1023
        %s214 = scalar_lea.vmem [#allocation5], %s213
        %s215 = scalar_lea.vmem %s112, 2 [#allocation8]
        // Predicated region
        $region93: #{tpu_custom_call.1} parent=23 // pred_check
          _
        $region94: #{tpu_custom_call.1} parent=23 // pred_check_branch
          %217 = sbr.rel target = $region96
        $region95: #{tpu_custom_call.1} parent=23 // pred_region
          // Predicated region
          $region108: #{tpu_custom_call.1} parent=95 // pred_check
            _
          $region109: #{tpu_custom_call.1} parent=95 // pred_check_branch
            %233 = sbr.rel (0) target = $region111
          $region110: #{tpu_custom_call.1} parent=95 // pred_region
            %s235 = ssub.s32 2, 1
            loop: start=0, step=1, limit=1
            $region112: #{tpu_custom_call.1} parent=110 // loop_pre_header
              _
            $region113: #{tpu_custom_call.1} parent=110 // loop_header
              %s237 = sphi 0, %s241
              %p238 = scmp.ge.s32.totalorder %s237, 1
              %s242 = sphi %s214, %s214
              %s243 = sphi %s215, %s215
            $region114: #{tpu_custom_call.1} parent=110 // loop_header_branch
              %240 = sbr.rel (%p238) target = $region118
            $region115: #{tpu_custom_call.1} parent=110 // loop_body
              %v244 = vld [vmem:[%s242] sm:%s235]
              %245 = vst [vmem:[%s243] sm:%s235] %v244
            $region116: #{tpu_custom_call.1} parent=110 // loop_footer
              %s241 = sadd.s32 1, %s237
            $region117: #{tpu_custom_call.1} parent=110 // loop_footer_branch
              %236 = sbr.rel target = $region113
            $region118: #{tpu_custom_call.1} parent=110 // loop_exit
              _
          $region111: #{tpu_custom_call.1} parent=95 // pred_fallthru
            _
        $region96: #{tpu_custom_call.1} parent=23 // pred_fallthru
          _
        // Predicated region
        $region97: #{tpu_custom_call.1} parent=23 // pred_check
          _
        $region98: #{tpu_custom_call.1} parent=23 // pred_check_branch
          %219 = sbr.rel (0) target = $region100
        $region99: #{tpu_custom_call.1} parent=23 // pred_region
          %s221 = ssub.s32 2, 1
          loop: start=0, step=1, limit=1
          $region101: #{tpu_custom_call.1} parent=99 // loop_pre_header
            _
          $region102: #{tpu_custom_call.1} parent=99 // loop_header
            %s223 = sphi 0, %s227
            %p224 = scmp.ge.s32.totalorder %s223, 1
            %s228 = sphi %s214, %s214
            %s229 = sphi %s215, %s215
          $region103: #{tpu_custom_call.1} parent=99 // loop_header_branch
            %226 = sbr.rel (%p224) target = $region107
          $region104: #{tpu_custom_call.1} parent=99 // loop_body
            %v230 = vld [vmem:[%s228] sm:%s221]
            %231 = vst [vmem:[%s229] sm:%s221] %v230
          $region105: #{tpu_custom_call.1} parent=99 // loop_footer
            %s227 = sadd.s32 1, %s223
          $region106: #{tpu_custom_call.1} parent=99 // loop_footer_branch
            %222 = sbr.rel target = $region102
          $region107: #{tpu_custom_call.1} parent=99 // loop_exit
            _
        $region100: #{tpu_custom_call.1} parent=23 // pred_fallthru
          _
        // Predicated region
        $region119: #{tpu_custom_call.1} parent=23 // pred_check
          _
        $region120: #{tpu_custom_call.1} parent=23 // pred_check_branch
          %248 = sbr.rel (0) target = $region122
        $region121: #{tpu_custom_call.1} parent=23 // pred_region
          %249 = vsyncadd [#allocation4], 16
        $region122: #{tpu_custom_call.1} parent=23 // pred_fallthru
          _
        %s250 = sld [smem:[#allocation2 + $0x3]]
        %p251 = scmp.gt.s32.totalorder %s250, 0
        %s252 = scalar_select %p251, %s250, 0
        %p253 = scmp.lt.s32.totalorder %s252, 1023
        %s254 = scalar_select %p253, %s252, 1023
        %s255 = scalar_lea.vmem [#allocation5], %s254
        %s256 = scalar_lea.vmem %s112, 3 [#allocation8]
        // Predicated region
        $region123: #{tpu_custom_call.1} parent=23 // pred_check
          _
        $region124: #{tpu_custom_call.1} parent=23 // pred_check_branch
          %258 = sbr.rel target = $region126
        $region125: #{tpu_custom_call.1} parent=23 // pred_region
          // Predicated region
          $region138: #{tpu_custom_call.1} parent=125 // pred_check
            _
          $region139: #{tpu_custom_call.1} parent=125 // pred_check_branch
            %274 = sbr.rel (0) target = $region141
          $region140: #{tpu_custom_call.1} parent=125 // pred_region
            %s276 = ssub.s32 2, 1
            loop: start=0, step=1, limit=1
            $region142: #{tpu_custom_call.1} parent=140 // loop_pre_header
              _
            $region143: #{tpu_custom_call.1} parent=140 // loop_header
              %s278 = sphi 0, %s282
              %p279 = scmp.ge.s32.totalorder %s278, 1
              %s283 = sphi %s255, %s255
              %s284 = sphi %s256, %s256
            $region144: #{tpu_custom_call.1} parent=140 // loop_header_branch
              %281 = sbr.rel (%p279) target = $region148
            $region145: #{tpu_custom_call.1} parent=140 // loop_body
              %v285 = vld [vmem:[%s283] sm:%s276]
              %286 = vst [vmem:[%s284] sm:%s276] %v285
            $region146: #{tpu_custom_call.1} parent=140 // loop_footer
              %s282 = sadd.s32 1, %s278
            $region147: #{tpu_custom_call.1} parent=140 // loop_footer_branch
              %277 = sbr.rel target = $region143
            $region148: #{tpu_custom_call.1} parent=140 // loop_exit
              _
          $region141: #{tpu_custom_call.1} parent=125 // pred_fallthru
            _
        $region126: #{tpu_custom_call.1} parent=23 // pred_fallthru
          _
        // Predicated region
        $region127: #{tpu_custom_call.1} parent=23 // pred_check
          _
        $region128: #{tpu_custom_call.1} parent=23 // pred_check_branch
          %260 = sbr.rel (0) target = $region130
        $region129: #{tpu_custom_call.1} parent=23 // pred_region
          %s262 = ssub.s32 2, 1
          loop: start=0, step=1, limit=1
          $region131: #{tpu_custom_call.1} parent=129 // loop_pre_header
            _
          $region132: #{tpu_custom_call.1} parent=129 // loop_header
            %s264 = sphi 0, %s268
            %p265 = scmp.ge.s32.totalorder %s264, 1
            %s269 = sphi %s255, %s255
            %s270 = sphi %s256, %s256
          $region133: #{tpu_custom_call.1} parent=129 // loop_header_branch
            %267 = sbr.rel (%p265) target = $region137
          $region134: #{tpu_custom_call.1} parent=129 // loop_body
            %v271 = vld [vmem:[%s269] sm:%s262]
            %272 = vst [vmem:[%s270] sm:%s262] %v271
          $region135: #{tpu_custom_call.1} parent=129 // loop_footer
            %s268 = sadd.s32 1, %s264
          $region136: #{tpu_custom_call.1} parent=129 // loop_footer_branch
            %263 = sbr.rel target = $region132
          $region137: #{tpu_custom_call.1} parent=129 // loop_exit
            _
        $region130: #{tpu_custom_call.1} parent=23 // pred_fallthru
          _
        // Predicated region
        $region149: #{tpu_custom_call.1} parent=23 // pred_check
          _
        $region150: #{tpu_custom_call.1} parent=23 // pred_check_branch
          %289 = sbr.rel (0) target = $region152
        $region151: #{tpu_custom_call.1} parent=23 // pred_region
          %290 = vsyncadd [#allocation4], 16
        $region152: #{tpu_custom_call.1} parent=23 // pred_fallthru
          _
        %s291 = sld [smem:[#allocation2 + $0x4]]
        %p292 = scmp.gt.s32.totalorder %s291, 0
        %s293 = scalar_select %p292, %s291, 0
        %p294 = scmp.lt.s32.totalorder %s293, 1023
        %s295 = scalar_select %p294, %s293, 1023
        %s296 = scalar_lea.vmem [#allocation5], %s295
        %s297 = scalar_lea.vmem %s112, 4 [#allocation8]
        // Predicated region
        $region153: #{tpu_custom_call.1} parent=23 // pred_check
          _
        $region154: #{tpu_custom_call.1} parent=23 // pred_check_branch
          %299 = sbr.rel target = $region156
        $region155: #{tpu_custom_call.1} parent=23 // pred_region
          // Predicated region
          $region168: #{tpu_custom_call.1} parent=155 // pred_check
            _
          $region169: #{tpu_custom_call.1} parent=155 // pred_check_branch
            %315 = sbr.rel (0) target = $region171
          $region170: #{tpu_custom_call.1} parent=155 // pred_region
            %s317 = ssub.s32 2, 1
            loop: start=0, step=1, limit=1
            $region172: #{tpu_custom_call.1} parent=170 // loop_pre_header
              _
            $region173: #{tpu_custom_call.1} parent=170 // loop_header
              %s319 = sphi 0, %s323
              %p320 = scmp.ge.s32.totalorder %s319, 1
              %s324 = sphi %s296, %s296
              %s325 = sphi %s297, %s297
            $region174: #{tpu_custom_call.1} parent=170 // loop_header_branch
              %322 = sbr.rel (%p320) target = $region178
            $region175: #{tpu_custom_call.1} parent=170 // loop_body
              %v326 = vld [vmem:[%s324] sm:%s317]
              %327 = vst [vmem:[%s325] sm:%s317] %v326
            $region176: #{tpu_custom_call.1} parent=170 // loop_footer
              %s323 = sadd.s32 1, %s319
            $region177: #{tpu_custom_call.1} parent=170 // loop_footer_branch
              %318 = sbr.rel target = $region173
            $region178: #{tpu_custom_call.1} parent=170 // loop_exit
              _
          $region171: #{tpu_custom_call.1} parent=155 // pred_fallthru
            _
        $region156: #{tpu_custom_call.1} parent=23 // pred_fallthru
          _
        // Predicated region
        $region157: #{tpu_custom_call.1} parent=23 // pred_check
          _
        $region158: #{tpu_custom_call.1} parent=23 // pred_check_branch
          %301 = sbr.rel (0) target = $region160
        $region159: #{tpu_custom_call.1} parent=23 // pred_region
          %s303 = ssub.s32 2, 1
          loop: start=0, step=1, limit=1
          $region161: #{tpu_custom_call.1} parent=159 // loop_pre_header
            _
          $region162: #{tpu_custom_call.1} parent=159 // loop_header
            %s305 = sphi 0, %s309
            %p306 = scmp.ge.s32.totalorder %s305, 1
            %s310 = sphi %s296, %s296
            %s311 = sphi %s297, %s297
          $region163: #{tpu_custom_call.1} parent=159 // loop_header_branch
            %308 = sbr.rel (%p306) target = $region167
          $region164: #{tpu_custom_call.1} parent=159 // loop_body
            %v312 = vld [vmem:[%s310] sm:%s303]
            %313 = vst [vmem:[%s311] sm:%s303] %v312
          $region165: #{tpu_custom_call.1} parent=159 // loop_footer
            %s309 = sadd.s32 1, %s305
          $region166: #{tpu_custom_call.1} parent=159 // loop_footer_branch
            %304 = sbr.rel target = $region162
          $region167: #{tpu_custom_call.1} parent=159 // loop_exit
            _
        $region160: #{tpu_custom_call.1} parent=23 // pred_fallthru
          _
        // Predicated region
        $region179: #{tpu_custom_call.1} parent=23 // pred_check
          _
        $region180: #{tpu_custom_call.1} parent=23 // pred_check_branch
          %330 = sbr.rel (0) target = $region182
        $region181: #{tpu_custom_call.1} parent=23 // pred_region
          %331 = vsyncadd [#allocation4], 16
        $region182: #{tpu_custom_call.1} parent=23 // pred_fallthru
          _
        %s332 = sld [smem:[#allocation2 + $0x5]]
        %p333 = scmp.gt.s32.totalorder %s332, 0
        %s334 = scalar_select %p333, %s332, 0
        %p335 = scmp.lt.s32.totalorder %s334, 1023
        %s336 = scalar_select %p335, %s334, 1023
        %s337 = scalar_lea.vmem [#allocation5], %s336
        %s338 = scalar_lea.vmem %s112, 5 [#allocation8]
        // Predicated region
        $region183: #{tpu_custom_call.1} parent=23 // pred_check
          _
        $region184: #{tpu_custom_call.1} parent=23 // pred_check_branch
          %340 = sbr.rel target = $region186
        $region185: #{tpu_custom_call.1} parent=23 // pred_region
          // Predicated region
          $region198: #{tpu_custom_call.1} parent=185 // pred_check
            _
          $region199: #{tpu_custom_call.1} parent=185 // pred_check_branch
            %356 = sbr.rel (0) target = $region201
          $region200: #{tpu_custom_call.1} parent=185 // pred_region
            %s358 = ssub.s32 2, 1
            loop: start=0, step=1, limit=1
            $region202: #{tpu_custom_call.1} parent=200 // loop_pre_header
              _
            $region203: #{tpu_custom_call.1} parent=200 // loop_header
              %s360 = sphi 0, %s364
              %p361 = scmp.ge.s32.totalorder %s360, 1
              %s365 = sphi %s337, %s337
              %s366 = sphi %s338, %s338
            $region204: #{tpu_custom_call.1} parent=200 // loop_header_branch
              %363 = sbr.rel (%p361) target = $region208
            $region205: #{tpu_custom_call.1} parent=200 // loop_body
              %v367 = vld [vmem:[%s365] sm:%s358]
              %368 = vst [vmem:[%s366] sm:%s358] %v367
            $region206: #{tpu_custom_call.1} parent=200 // loop_footer
              %s364 = sadd.s32 1, %s360
            $region207: #{tpu_custom_call.1} parent=200 // loop_footer_branch
              %359 = sbr.rel target = $region203
            $region208: #{tpu_custom_call.1} parent=200 // loop_exit
              _
          $region201: #{tpu_custom_call.1} parent=185 // pred_fallthru
            _
        $region186: #{tpu_custom_call.1} parent=23 // pred_fallthru
          _
        // Predicated region
        $region187: #{tpu_custom_call.1} parent=23 // pred_check
          _
        $region188: #{tpu_custom_call.1} parent=23 // pred_check_branch
          %342 = sbr.rel (0) target = $region190
        $region189: #{tpu_custom_call.1} parent=23 // pred_region
          %s344 = ssub.s32 2, 1
          loop: start=0, step=1, limit=1
          $region191: #{tpu_custom_call.1} parent=189 // loop_pre_header
            _
          $region192: #{tpu_custom_call.1} parent=189 // loop_header
            %s346 = sphi 0, %s350
            %p347 = scmp.ge.s32.totalorder %s346, 1
            %s351 = sphi %s337, %s337
            %s352 = sphi %s338, %s338
          $region193: #{tpu_custom_call.1} parent=189 // loop_header_branch
            %349 = sbr.rel (%p347) target = $region197
          $region194: #{tpu_custom_call.1} parent=189 // loop_body
            %v353 = vld [vmem:[%s351] sm:%s344]
            %354 = vst [vmem:[%s352] sm:%s344] %v353
          $region195: #{tpu_custom_call.1} parent=189 // loop_footer
            %s350 = sadd.s32 1, %s346
          $region196: #{tpu_custom_call.1} parent=189 // loop_footer_branch
            %345 = sbr.rel target = $region192
          $region197: #{tpu_custom_call.1} parent=189 // loop_exit
            _
        $region190: #{tpu_custom_call.1} parent=23 // pred_fallthru
          _
        // Predicated region
        $region209: #{tpu_custom_call.1} parent=23 // pred_check
          _
        $region210: #{tpu_custom_call.1} parent=23 // pred_check_branch
          %371 = sbr.rel (0) target = $region212
        $region211: #{tpu_custom_call.1} parent=23 // pred_region
          %372 = vsyncadd [#allocation4], 16
        $region212: #{tpu_custom_call.1} parent=23 // pred_fallthru
          _
        %s373 = sld [smem:[#allocation2 + $0x6]]
        %p374 = scmp.gt.s32.totalorder %s373, 0
        %s375 = scalar_select %p374, %s373, 0
        %p376 = scmp.lt.s32.totalorder %s375, 1023
        %s377 = scalar_select %p376, %s375, 1023
        %s378 = scalar_lea.vmem [#allocation5], %s377
        %s379 = scalar_lea.vmem %s112, 6 [#allocation8]
        // Predicated region
        $region213: #{tpu_custom_call.1} parent=23 // pred_check
          _
        $region214: #{tpu_custom_call.1} parent=23 // pred_check_branch
          %381 = sbr.rel target = $region216
        $region215: #{tpu_custom_call.1} parent=23 // pred_region
          // Predicated region
          $region228: #{tpu_custom_call.1} parent=215 // pred_check
            _
          $region229: #{tpu_custom_call.1} parent=215 // pred_check_branch
            %397 = sbr.rel (0) target = $region231
          $region230: #{tpu_custom_call.1} parent=215 // pred_region
            %s399 = ssub.s32 2, 1
            loop: start=0, step=1, limit=1
            $region232: #{tpu_custom_call.1} parent=230 // loop_pre_header
              _
            $region233: #{tpu_custom_call.1} parent=230 // loop_header
              %s401 = sphi 0, %s405
              %p402 = scmp.ge.s32.totalorder %s401, 1
              %s406 = sphi %s378, %s378
              %s407 = sphi %s379, %s379
            $region234: #{tpu_custom_call.1} parent=230 // loop_header_branch
              %404 = sbr.rel (%p402) target = $region238
            $region235: #{tpu_custom_call.1} parent=230 // loop_body
              %v408 = vld [vmem:[%s406] sm:%s399]
              %409 = vst [vmem:[%s407] sm:%s399] %v408
            $region236: #{tpu_custom_call.1} parent=230 // loop_footer
              %s405 = sadd.s32 1, %s401
            $region237: #{tpu_custom_call.1} parent=230 // loop_footer_branch
              %400 = sbr.rel target = $region233
            $region238: #{tpu_custom_call.1} parent=230 // loop_exit
              _
          $region231: #{tpu_custom_call.1} parent=215 // pred_fallthru
            _
        $region216: #{tpu_custom_call.1} parent=23 // pred_fallthru
          _
        // Predicated region
        $region217: #{tpu_custom_call.1} parent=23 // pred_check
          _
        $region218: #{tpu_custom_call.1} parent=23 // pred_check_branch
          %383 = sbr.rel (0) target = $region220
        $region219: #{tpu_custom_call.1} parent=23 // pred_region
          %s385 = ssub.s32 2, 1
          loop: start=0, step=1, limit=1
          $region221: #{tpu_custom_call.1} parent=219 // loop_pre_header
            _
          $region222: #{tpu_custom_call.1} parent=219 // loop_header
            %s387 = sphi 0, %s391
            %p388 = scmp.ge.s32.totalorder %s387, 1
            %s392 = sphi %s378, %s378
            %s393 = sphi %s379, %s379
          $region223: #{tpu_custom_call.1} parent=219 // loop_header_branch
            %390 = sbr.rel (%p388) target = $region227
          $region224: #{tpu_custom_call.1} parent=219 // loop_body
            %v394 = vld [vmem:[%s392] sm:%s385]
            %395 = vst [vmem:[%s393] sm:%s385] %v394
          $region225: #{tpu_custom_call.1} parent=219 // loop_footer
            %s391 = sadd.s32 1, %s387
          $region226: #{tpu_custom_call.1} parent=219 // loop_footer_branch
            %386 = sbr.rel target = $region222
          $region227: #{tpu_custom_call.1} parent=219 // loop_exit
            _
        $region220: #{tpu_custom_call.1} parent=23 // pred_fallthru
          _
        // Predicated region
        $region239: #{tpu_custom_call.1} parent=23 // pred_check
          _
        $region240: #{tpu_custom_call.1} parent=23 // pred_check_branch
          %412 = sbr.rel (0) target = $region242
        $region241: #{tpu_custom_call.1} parent=23 // pred_region
          %413 = vsyncadd [#allocation4], 16
        $region242: #{tpu_custom_call.1} parent=23 // pred_fallthru
          _
        %s414 = sld [smem:[#allocation2 + $0x7]]
        %p415 = scmp.gt.s32.totalorder %s414, 0
        %s416 = scalar_select %p415, %s414, 0
        %p417 = scmp.lt.s32.totalorder %s416, 1023
        %s418 = scalar_select %p417, %s416, 1023
        %s419 = scalar_lea.vmem [#allocation5], %s418
        %s420 = scalar_lea.vmem %s112, 7 [#allocation8]
        // Predicated region
        $region243: #{tpu_custom_call.1} parent=23 // pred_check
          _
        $region244: #{tpu_custom_call.1} parent=23 // pred_check_branch
          %422 = sbr.rel target = $region246
        $region245: #{tpu_custom_call.1} parent=23 // pred_region
          // Predicated region
          $region258: #{tpu_custom_call.1} parent=245 // pred_check
            _
          $region259: #{tpu_custom_call.1} parent=245 // pred_check_branch
            %438 = sbr.rel (0) target = $region261
          $region260: #{tpu_custom_call.1} parent=245 // pred_region
            %s440 = ssub.s32 2, 1
            loop: start=0, step=1, limit=1
            $region262: #{tpu_custom_call.1} parent=260 // loop_pre_header
              _
            $region263: #{tpu_custom_call.1} parent=260 // loop_header
              %s442 = sphi 0, %s446
              %p443 = scmp.ge.s32.totalorder %s442, 1
              %s447 = sphi %s419, %s419
              %s448 = sphi %s420, %s420
            $region264: #{tpu_custom_call.1} parent=260 // loop_header_branch
              %445 = sbr.rel (%p443) target = $region268
            $region265: #{tpu_custom_call.1} parent=260 // loop_body
              %v449 = vld [vmem:[%s447] sm:%s440]
              %450 = vst [vmem:[%s448] sm:%s440] %v449
            $region266: #{tpu_custom_call.1} parent=260 // loop_footer
              %s446 = sadd.s32 1, %s442
            $region267: #{tpu_custom_call.1} parent=260 // loop_footer_branch
              %441 = sbr.rel target = $region263
            $region268: #{tpu_custom_call.1} parent=260 // loop_exit
              _
          $region261: #{tpu_custom_call.1} parent=245 // pred_fallthru
            _
        $region246: #{tpu_custom_call.1} parent=23 // pred_fallthru
          _
        // Predicated region
        $region247: #{tpu_custom_call.1} parent=23 // pred_check
          _
        $region248: #{tpu_custom_call.1} parent=23 // pred_check_branch
          %424 = sbr.rel (0) target = $region250
        $region249: #{tpu_custom_call.1} parent=23 // pred_region
          %s426 = ssub.s32 2, 1
          loop: start=0, step=1, limit=1
          $region251: #{tpu_custom_call.1} parent=249 // loop_pre_header
            _
          $region252: #{tpu_custom_call.1} parent=249 // loop_header
            %s428 = sphi 0, %s432
            %p429 = scmp.ge.s32.totalorder %s428, 1
            %s433 = sphi %s419, %s419
            %s434 = sphi %s420, %s420
          $region253: #{tpu_custom_call.1} parent=249 // loop_header_branch
            %431 = sbr.rel (%p429) target = $region257
          $region254: #{tpu_custom_call.1} parent=249 // loop_body
            %v435 = vld [vmem:[%s433] sm:%s426]
            %436 = vst [vmem:[%s434] sm:%s426] %v435
          $region255: #{tpu_custom_call.1} parent=249 // loop_footer
            %s432 = sadd.s32 1, %s428
          $region256: #{tpu_custom_call.1} parent=249 // loop_footer_branch
            %427 = sbr.rel target = $region252
          $region257: #{tpu_custom_call.1} parent=249 // loop_exit
            _
        $region250: #{tpu_custom_call.1} parent=23 // pred_fallthru
          _
        // Predicated region
        $region269: #{tpu_custom_call.1} parent=23 // pred_check
          _
        $region270: #{tpu_custom_call.1} parent=23 // pred_check_branch
          %453 = sbr.rel (0) target = $region272
        $region271: #{tpu_custom_call.1} parent=23 // pred_region
          %454 = vsyncadd [#allocation4], 16
        $region272: #{tpu_custom_call.1} parent=23 // pred_fallthru
          _
        %s455 = smul.u32 8, 1
        %s456 = sshll.u32 %s455, 4
        %457 = dma.done [#allocation4], %s456
        %s458 = sand.u32 %s46, 1
        %s459 = scalar_lea.sflag [#allocation7], %s458
        %s460 = sand.u32 %s46, 1
        %s461 = smul.addr %s460, 8
        %s462 = scalar_lea.vmem [#allocation8], %s461
        // Predicated region
        $region273: #{tpu_custom_call.1} parent=23 // pred_check
          %p463 = pneg %p56
        $region274: #{tpu_custom_call.1} parent=23 // pred_check_branch
          %465 = sbr.rel (%p463) target = $region276
        $region275: #{tpu_custom_call.1} parent=23 // pred_region
          %467 = vsyncadd %s459, 0
          %s468 = smul.addr %s17, 8
          %s469 = scalar_lea.hbm %s2, %s468
          %s471 = sshll.u32 %s462, 4
          %s472 = int_to_ptr.vmem [resolvable:$true] %s471
          %s473 = sshll.u32 %s469, 4
          %s474 = int_to_ptr.hbm [resolvable:$true] %s473
          %476 = dma.vmem_to_hbm [thread:$0]  %s472, 128, %s474, %s459
        $region276: #{tpu_custom_call.1} parent=23 // pred_fallthru
          _
      $region24: #{tpu_custom_call.1} parent=5 // pred_fallthru
        _
      %p477 = scmp.le.s32.totalorder 2, %s12
      // Predicated region
      $region277: #{tpu_custom_call.1} parent=5 // pred_check
        %p478 = pneg %p477
      $region278: #{tpu_custom_call.1} parent=5 // pred_check_branch
        %480 = sbr.rel (%p478) target = $region280
      $region279: #{tpu_custom_call.1} parent=5 // pred_region
        %s481 = ssub.s32 %s12, 2
        // Predicated region
        $region281: #{tpu_custom_call.1} parent=279 // pred_check
          %p482 = pneg %p62
        $region282: #{tpu_custom_call.1} parent=279 // pred_check_branch
          %484 = sbr.rel (%p482) target = $region284
        $region283: #{tpu_custom_call.1} parent=279 // pred_region
          %s485 = sand.u32 %s47, 1
          %s486 = scalar_lea.sflag [#allocation7], %s485
          %s487 = sand.u32 %s47, 1
          %s488 = smul.addr %s487, 8
          %s489 = scalar_lea.vmem [#allocation8], %s488
          %491 = dma.done %s486, 128
        $region284: #{tpu_custom_call.1} parent=279 // pred_fallthru
          _
      $region280: #{tpu_custom_call.1} parent=5 // pred_fallthru
        _
    $region6: #{tpu_custom_call.1} parent=1 // loop_footer
      %s16 = sadd.s32 1, %s12
    $region7: #{tpu_custom_call.1} parent=1 // loop_footer_branch
      %11 = sbr.rel target = $region3
    $region8: #{tpu_custom_call.1} parent=1 // loop_exit
      _
    %492 = vsyncpa [#allocation6], 1
    %s493 = scalar_lea.sflag [#allocation6], 1
    %494 = vsyncpa %s493, 1
    %495 = vsyncpa [#allocation7], 1
    %s496 = scalar_lea.sflag [#allocation7], 1
    %497 = vsyncpa %s496, 1
  %498 = vsyncmov [#allocation3]
  %s499 = vpop.sfrf %498
  %p500 = scmp.eq.s32.totalorder %s499, 0
  %p501 = pneg %p500
  %503 = shalt.err (%p501)
  %504 = vsyncmov [#allocation4]
  %s505 = vpop.sfrf %504
  %p506 = scmp.eq.s32.totalorder %s505, 0
  %p507 = pneg %p506
  %509 = shalt.err (%p507)

</llo_original>
